<compile_context>
chip_gen: v5e
topology: v5e:2x2
jax: 0.10.0
libtpu: 0.0.40
codegen_flags: <defaults>
</compile_context>

<pallas_src>
import math
import functools

import jax
import jax.numpy as jnp
import numpy as np
from jax.experimental import pallas as pl
from jax.experimental.pallas import tpu as pltpu

# ----------------------------- configuration -------------------------------
B = 2            # batch
D_MODEL = 32     # d_model
NHEAD = 4        # number of heads
HEAD_DIM = D_MODEL // NHEAD
D_FF = 64        # dim_feedforward
S_PAST = 8       # past sequence length -> total keys T = S_PAST + 1
T_KV = S_PAST + 1
LN_EPS = 1e-5


# ------------------------------- kernel ------------------------------------
def _layernorm(x, gamma, beta):
    # PyTorch LayerNorm: biased variance over last dim, eps inside the sqrt.
    mean = jnp.mean(x, axis=-1, keepdims=True)
    cent = x - mean
    var = jnp.mean(cent * cent, axis=-1, keepdims=True)
    return cent * jax.lax.rsqrt(var + LN_EPS) * gamma + beta


def _encoder_layer_kernel(x_ref, pk_ref, pv_ref, wkvm_ref, wp_ref, bias_ref,
                          y_ref, kv_ref, *, d_model, d_ff, s_past, n_batch):
    f32 = jnp.float32
    D, F, S, Bsz = d_model, d_ff, s_past, n_batch
    T = S + 1
    L = 2 * Bsz * D                  # lane width of the combined K/V slab (=128)

    x = x_ref[...].astype(f32)       # (B, 1, D)
    pk = pk_ref[...].astype(f32)     # (B, S, D)
    pv = pv_ref[...].astype(f32)     # (B, S, D)

    # ---- combined cache slab (built from inputs only; outputs never read) ----
    # lanes: [key_b0 | key_b1 | ... | value_b0 | value_b1 | ...]
    past_slab = jnp.concatenate([pk[b] for b in range(Bsz)]
                                + [pv[b] for b in range(Bsz)], axis=-1)      # (S, L)
    new_slab = jnp.concatenate([x[b] for b in range(Bsz)] * 2, axis=-1)      # (1, L)
    ckv = jnp.concatenate([past_slab, new_slab], axis=0)                     # (T, L)

    # ---- unpack small params (sublane-aligned row slices only) ----
    Wp = wp_ref[...]                 # (3D + F, F)
    wq = Wp[0:D, :D]                 # pre-scaled by 1/sqrt(head_dim)
    wo = Wp[D:2 * D, :D]
    w1 = Wp[2 * D:3 * D, :]
    w2 = Wp[3 * D:3 * D + F, :D]

    bias = bias_ref[...].astype(f32)                       # (8, L)
    b_kv = bias[0:1, :]
    b1 = bias[1:2, :F]
    bq, bo = bias[2:3, :D], bias[2:3, D:2 * D]
    g1, be1 = bias[3:4, :D], bias[3:4, D:2 * D]
    g2, be2 = bias[4:5, :D], bias[4:5, D:2 * D]
    b2 = bias[5:6, :D]

    # ---- fused K/V in-projection for all batches (single MXU issue) ----
    kv = jnp.dot(ckv, wkvm_ref[0:L, :], preferred_element_type=f32) + b_kv   # (T, L)

    # ---- query projection (weights pre-scaled) ----
    x2 = x[:, 0, :]                                                          # (B, D)
    q = jnp.dot(x2, wq, preferred_element_type=f32) + bq                     # (B, D)
    q_slab = jnp.concatenate([q[b:b + 1, :] for b in range(Bsz)] * 2, axis=-1)  # (1, L)

    # ---- attention scores for all batches & heads in one dot ----
    # The score matrix (rows L:2L of wkvm) sums q*k within each head and places
    # the replicated per-head score on the matching projected-V lanes.
    qk = kv * q_slab                                                         # (T, L)
    s = jnp.dot(qk, wkvm_ref[L:2 * L, :], preferred_element_type=f32)        # (T, L)
    s = s - jnp.max(s, axis=0, keepdims=True)
    e = jnp.exp(s)
    p = e * pl.reciprocal(jnp.sum(e, axis=0, keepdims=True), approx=True)
    attn_slab = jnp.sum(p * kv, axis=0, keepdims=True)                       # (1, L)
    attn = jnp.concatenate(
        [attn_slab[:, (Bsz + b) * D:(Bsz + b + 1) * D] for b in range(Bsz)],
        axis=0)                                                              # (B, D)

    # ---- out-projection + residual + norm1 ----
    attn = jnp.dot(attn, wo, preferred_element_type=f32) + bo
    h1 = _layernorm(attn + x2, g1, be1)

    # ---- feed-forward + residual + norm2 ----
    ff = jnp.maximum(jnp.dot(h1, w1, preferred_element_type=f32) + b1, 0.0)
    ff = jnp.dot(ff, w2, preferred_element_type=f32) + b2
    out = _layernorm(ff + h1, g2, be2)

    # ---- pure stores (no read-back); cache slab is one lane-dense store ----
    y_ref[...] = out.astype(y_ref.dtype)
    kv_ref[...] = ckv.astype(kv_ref.dtype)


# ------------------------------- packing ------------------------------------
def pack_params(p):
    """Pack the 19 small parameter tensors into 3 lane/sublane-friendly arrays."""
    D, F = p["w1"].shape
    HD = D // NHEAD
    L = 2 * B * D
    scale = 1.0 / math.sqrt(HD)

    # (L, L) block-diagonal K/V in-projection: lanes [k_b0|k_b1|v_b0|v_b1]
    # -> lanes [K_b0|K_b1|V_b0|V_b1].
    zero = jnp.zeros((D, D), jnp.float32)
    blocks = [p["wk"]] * B + [p["wv"]] * B
    w_kv = jnp.block([[blocks[i] if i == j else zero for j in range(2 * B)]
                      for i in range(2 * B)])

    # (L, L) score matrix: row r (projected-K lane) -> col c (projected-V lane)
    # of the same batch and head.
    r = np.arange(L)[:, None]
    c = np.arange(L)[None, :]
    m_big = ((r < B * D) & (c >= B * D)
             & ((r // D) == ((c - B * D) // D))
             & (((r % D) // HD) == ((c % D) // HD))).astype(np.float32)

    w_kvm = jnp.concatenate([w_kv, jnp.asarray(m_big)], axis=0)              # (2L, L)

    # Vertically stacked small weights -> sublane-aligned slices in-kernel.
    w_pack = jnp.zeros((3 * D + F, F), jnp.float32)
    w_pack = w_pack.at[0:D, :D].set(p["wq"] * scale)
    w_pack = w_pack.at[D:2 * D, :D].set(p["wo"])
    w_pack = w_pack.at[2 * D:3 * D, :].set(p["w1"])
    w_pack = w_pack.at[3 * D:3 * D + F, :D].set(p["w2"])

    bias = jnp.zeros((8, L), jnp.float32)
    b_kv = jnp.concatenate([p["bk"]] * B + [p["bv"]] * B, axis=-1).reshape(-1)
    bias = bias.at[0, :].set(b_kv)
    bias = bias.at[1, :F].set(p["b1"].reshape(-1))
    bias = bias.at[2, :D].set((p["bq"] * scale).reshape(-1))
    bias = bias.at[2, D:2 * D].set(p["bo"].reshape(-1))
    bias = bias.at[3, :D].set(p["g1"].reshape(-1))
    bias = bias.at[3, D:2 * D].set(p["be1"].reshape(-1))
    bias = bias.at[4, :D].set(p["g2"].reshape(-1))
    bias = bias.at[4, D:2 * D].set(p["be2"].reshape(-1))
    bias = bias.at[5, :D].set(p["b2"].reshape(-1))
    return w_kvm, w_pack, bias


# ------------------------------- wrapper ------------------------------------
@jax.jit
def streaming_tfm_layer(x, past_key, past_value, w_kvm, w_pack, bias_pack):
    """x: (B, 1, D); past_key/past_value: (B, S, D).

    Returns (output (B,1,D), new_key (B,S+1,D), new_value (B,S+1,D)).
    """
    Bsz, _, D = x.shape
    S = past_key.shape[1]
    T = S + 1
    F = w_pack.shape[1]
    L = 2 * Bsz * D

    kernel = functools.partial(
        _encoder_layer_kernel, d_model=D, d_ff=F, s_past=S, n_batch=Bsz)

    vmem = pl.BlockSpec(memory_space=pltpu.MemorySpace.VMEM)
    y2, kv_slab = pl.pallas_call(
        kernel,
        out_shape=(
            jax.ShapeDtypeStruct((Bsz, D), x.dtype),
            jax.ShapeDtypeStruct((T, L), x.dtype),      # lane-dense combined cache
        ),
        in_specs=[vmem] * 6,
        out_specs=(vmem, vmem),
    )(x, past_key, past_value, w_kvm, w_pack, bias_pack)

    # Unpack the lane-dense cache slab back to the module's (B, T, D) API.
    new_key = jnp.stack([kv_slab[:, b * D:(b + 1) * D] for b in range(Bsz)], axis=0)
    new_value = jnp.stack([kv_slab[:, (Bsz + b) * D:(Bsz + b + 1) * D]
                           for b in range(Bsz)], axis=0)
    return y2.reshape(Bsz, 1, D), new_key, new_value


# --------------------------- pure-JAX reference ------------------------------
def reference(x, past_key, past_value, p):
    new_key = jnp.concatenate([past_key, x], axis=1)
    new_value = jnp.concatenate([past_value, x], axis=1)

    q = x @ p["wq"] + p["bq"]
    k = new_key @ p["wk"] + p["bk"]
    v = new_value @ p["wv"] + p["bv"]

    Bsz, T, D = k.shape
    qh = q.reshape(Bsz, 1, NHEAD, HEAD_DIM).transpose(0, 2, 1, 3)
    kh = k.reshape(Bsz, T, NHEAD, HEAD_DIM).transpose(0, 2, 1, 3)
    vh = v.reshape(Bsz, T, NHEAD, HEAD_DIM).transpose(0, 2, 1, 3)
    scores = jnp.einsum("bhqd,bhkd->bhqk", qh, kh) / math.sqrt(HEAD_DIM)
    attn = jax.nn.softmax(scores, axis=-1)
    o = jnp.einsum("bhqk,bhkd->bhqd", attn, vh)
    o = o.transpose(0, 2, 1, 3).reshape(Bsz, 1, D)
    o = o @ p["wo"] + p["bo"]

    def ln(z, g, b):
        m = jnp.mean(z, axis=-1, keepdims=True)
        var = jnp.mean((z - m) ** 2, axis=-1, keepdims=True)
        return (z - m) / jnp.sqrt(var + LN_EPS) * g + b

    h1 = ln(o + x, p["g1"], p["be1"])
    ff = jnp.maximum(h1 @ p["w1"] + p["b1"], 0.0) @ p["w2"] + p["b2"]
    out = ln(ff + h1, p["g2"], p["be2"])
    return out, new_key, new_value


# --------------------------------- main --------------------------------------
def make_params(key):
    ks = jax.random.split(key, 16)

    def w(k, shape, scale):
        return jax.random.normal(k, shape, jnp.float32) * scale

    D, F = D_MODEL, D_FF
    return {
        # attention in/out projections, stored (in, out)
        "wq": w(ks[0], (D, D), 1.0 / math.sqrt(D)),
        "bq": w(ks[1], (1, D), 0.02),
        "wk": w(ks[2], (D, D), 1.0 / math.sqrt(D)),
        "bk": w(ks[3], (1, D), 0.02),
        "wv": w(ks[4], (D, D), 1.0 / math.sqrt(D)),
        "bv": w(ks[5], (1, D), 0.02),
        "wo": w(ks[6], (D, D), 1.0 / math.sqrt(D)),
        "bo": w(ks[7], (1, D), 0.02),
        # norm1
        "g1": jnp.ones((1, D), jnp.float32) + w(ks[8], (1, D), 0.01),
        "be1": w(ks[9], (1, D), 0.01),
        # feed-forward, stored (in, out)
        "w1": w(ks[10], (D, F), 1.0 / math.sqrt(D)),
        "b1": w(ks[11], (1, F), 0.02),
        "w2": w(ks[12], (F, D), 1.0 / math.sqrt(F)),
        "b2": w(ks[13], (1, D), 0.02),
        # norm2
        "g2": jnp.ones((1, D), jnp.float32) + w(ks[14], (1, D), 0.01),
        "be2": w(ks[15], (1, D), 0.01),
    }


if __name__ == "__main__":
    root = jax.random.PRNGKey(0)
    k_p, k_x, k_pk, k_pv = jax.random.split(root, 4)

    params = make_params(k_p)
    x = jax.random.normal(k_x, (B, 1, D_MODEL), jnp.float32)
    past_key = jax.random.normal(k_pk, (B, S_PAST, D_MODEL), jnp.float32)
    past_value = jax.random.normal(k_pv, (B, S_PAST, D_MODEL), jnp.float32)

    w_kvm, w_pack, bias_pack = pack_params(params)

    out, new_k, new_v = streaming_tfm_layer(
        x, past_key, past_value, w_kvm, w_pack, bias_pack)
    jax.block_until_ready((out, new_k, new_v))

    # sanity check against pure-JAX reference
    ref_out, ref_k, ref_v = reference(x, past_key, past_value, params)
    # Output tolerance relaxed slightly (approx EUP reciprocal in the softmax denom).
    np.testing.assert_allclose(np.asarray(out), np.asarray(ref_out),
                               rtol=2e-3, atol=2e-3)
    # Cache outputs are an exact f32 passthrough of the inputs.
    np.testing.assert_allclose(np.asarray(new_k), np.asarray(ref_k))
    np.testing.assert_allclose(np.asarray(new_v), np.asarray(ref_v))

    print("KERNEL_OK")
</pallas_src>

<mosaic_0001>
module attributes {stable_mosaic.version = 11 : i64} {
  func.func @_encoder_layer_kernel(%arg0: memref<2x1x32xf32, #tpu.memory_space<vmem>>, %arg1: memref<2x8x32xf32, #tpu.memory_space<vmem>>, %arg2: memref<2x8x32xf32, #tpu.memory_space<vmem>>, %arg3: memref<256x128xf32, #tpu.memory_space<vmem>>, %arg4: memref<160x64xf32, #tpu.memory_space<vmem>>, %arg5: memref<8x128xf32, #tpu.memory_space<vmem>>, %arg6: memref<2x32xf32, #tpu.memory_space<vmem>>, %arg7: memref<9x128xf32, #tpu.memory_space<vmem>>) attributes {dimension_semantics = [], scalar_prefetch = 0 : i64, scratch_operands = 0 : i64, tpu.core_type = #tpu.core_type<tc>} {
    %c0 = arith.constant 0 : index
    %c0_0 = arith.constant 0 : index
    %c0_1 = arith.constant 0 : index
    %0 = vector.load %arg0[%c0, %c0_0, %c0_1] : memref<2x1x32xf32, #tpu.memory_space<vmem>>, vector<2x1x32xf32>
    %c0_2 = arith.constant 0 : index
    %c0_3 = arith.constant 0 : index
    %c0_4 = arith.constant 0 : index
    %1 = vector.load %arg1[%c0_2, %c0_3, %c0_4] : memref<2x8x32xf32, #tpu.memory_space<vmem>>, vector<2x8x32xf32>
    %c0_5 = arith.constant 0 : index
    %c0_6 = arith.constant 0 : index
    %c0_7 = arith.constant 0 : index
    %2 = vector.load %arg2[%c0_5, %c0_6, %c0_7] : memref<2x8x32xf32, #tpu.memory_space<vmem>>, vector<2x8x32xf32>
    %3 = vector.extract_strided_slice %1 {offsets = [0, 0, 0], sizes = [1, 8, 32], strides = [1, 1, 1]} : vector<2x8x32xf32> to vector<1x8x32xf32>
    %4 = vector.shape_cast %3 : vector<1x8x32xf32> to vector<8x32xf32>
    %5 = vector.extract_strided_slice %1 {offsets = [1, 0, 0], sizes = [1, 8, 32], strides = [1, 1, 1]} : vector<2x8x32xf32> to vector<1x8x32xf32>
    %6 = vector.shape_cast %5 : vector<1x8x32xf32> to vector<8x32xf32>
    %7 = vector.extract_strided_slice %2 {offsets = [0, 0, 0], sizes = [1, 8, 32], strides = [1, 1, 1]} : vector<2x8x32xf32> to vector<1x8x32xf32>
    %8 = vector.shape_cast %7 : vector<1x8x32xf32> to vector<8x32xf32>
    %9 = vector.extract_strided_slice %2 {offsets = [1, 0, 0], sizes = [1, 8, 32], strides = [1, 1, 1]} : vector<2x8x32xf32> to vector<1x8x32xf32>
    %10 = vector.shape_cast %9 : vector<1x8x32xf32> to vector<8x32xf32>
    %11 = tpu.concatenate %4, %6, %8, %10 in 1 : vector<8x32xf32>, vector<8x32xf32>, vector<8x32xf32>, vector<8x32xf32> -> vector<8x128xf32>
    %12 = vector.extract_strided_slice %0 {offsets = [0, 0, 0], sizes = [1, 1, 32], strides = [1, 1, 1]} : vector<2x1x32xf32> to vector<1x1x32xf32>
    %13 = vector.shape_cast %12 : vector<1x1x32xf32> to vector<1x32xf32>
    %14 = vector.extract_strided_slice %0 {offsets = [1, 0, 0], sizes = [1, 1, 32], strides = [1, 1, 1]} : vector<2x1x32xf32> to vector<1x1x32xf32>
    %15 = vector.shape_cast %14 : vector<1x1x32xf32> to vector<1x32xf32>
    %16 = tpu.concatenate %13, %15, %13, %15 in 1 : vector<1x32xf32>, vector<1x32xf32>, vector<1x32xf32>, vector<1x32xf32> -> vector<1x128xf32>
    %17 = tpu.concatenate %11, %16 in 0 : vector<8x128xf32>, vector<1x128xf32> -> vector<9x128xf32>
    %c0_8 = arith.constant 0 : index
    %c0_9 = arith.constant 0 : index
    %18 = vector.load %arg4[%c0_8, %c0_9] : memref<160x64xf32, #tpu.memory_space<vmem>>, vector<160x64xf32>
    %19 = vector.extract_strided_slice %18 {offsets = [0, 0], sizes = [32, 32], strides = [1, 1]} : vector<160x64xf32> to vector<32x32xf32>
    %20 = vector.extract_strided_slice %18 {offsets = [32, 0], sizes = [32, 32], strides = [1, 1]} : vector<160x64xf32> to vector<32x32xf32>
    %21 = vector.extract_strided_slice %18 {offsets = [64, 0], sizes = [32, 64], strides = [1, 1]} : vector<160x64xf32> to vector<32x64xf32>
    %22 = vector.extract_strided_slice %18 {offsets = [96, 0], sizes = [64, 32], strides = [1, 1]} : vector<160x64xf32> to vector<64x32xf32>
    %c0_10 = arith.constant 0 : index
    %c0_11 = arith.constant 0 : index
    %23 = vector.load %arg5[%c0_10, %c0_11] : memref<8x128xf32, #tpu.memory_space<vmem>>, vector<8x128xf32>
    %24 = vector.extract_strided_slice %23 {offsets = [0, 0], sizes = [1, 128], strides = [1, 1]} : vector<8x128xf32> to vector<1x128xf32>
    %25 = vector.extract_strided_slice %23 {offsets = [1, 0], sizes = [1, 64], strides = [1, 1]} : vector<8x128xf32> to vector<1x64xf32>
    %26 = vector.extract_strided_slice %23 {offsets = [2, 0], sizes = [1, 32], strides = [1, 1]} : vector<8x128xf32> to vector<1x32xf32>
    %27 = vector.extract_strided_slice %23 {offsets = [2, 32], sizes = [1, 32], strides = [1, 1]} : vector<8x128xf32> to vector<1x32xf32>
    %28 = vector.extract_strided_slice %23 {offsets = [3, 0], sizes = [1, 32], strides = [1, 1]} : vector<8x128xf32> to vector<1x32xf32>
    %29 = vector.extract_strided_slice %23 {offsets = [3, 32], sizes = [1, 32], strides = [1, 1]} : vector<8x128xf32> to vector<1x32xf32>
    %30 = vector.extract_strided_slice %23 {offsets = [4, 0], sizes = [1, 32], strides = [1, 1]} : vector<8x128xf32> to vector<1x32xf32>
    %31 = vector.extract_strided_slice %23 {offsets = [4, 32], sizes = [1, 32], strides = [1, 1]} : vector<8x128xf32> to vector<1x32xf32>
    %32 = vector.extract_strided_slice %23 {offsets = [5, 0], sizes = [1, 32], strides = [1, 1]} : vector<8x128xf32> to vector<1x32xf32>
    %c0_12 = arith.constant 0 : index
    %c0_13 = arith.constant 0 : index
    %33 = vector.load %arg3[%c0_12, %c0_13] : memref<256x128xf32, #tpu.memory_space<vmem>>, vector<128x128xf32>
    %cst = arith.constant dense<0.000000e+00> : vector<9x128xf32>
    %34 = tpu.matmul %17, %33, %cst {dimension_numbers = #tpu.dot_dimension_numbers<[1], [0], [0], [1], [0, 0, 1, 1], [], []>} : vector<9x128xf32>, vector<128x128xf32>, vector<9x128xf32> -> vector<9x128xf32>
    %35 = vector.broadcast %24 : vector<1x128xf32> to vector<9x128xf32>
    %36 = arith.addf %34, %35 : vector<9x128xf32>
    %37 = vector.shape_cast %0 : vector<2x1x32xf32> to vector<2x32xf32>
    %cst_14 = arith.constant dense<0.000000e+00> : vector<2x32xf32>
    %38 = tpu.matmul %37, %19, %cst_14 {dimension_numbers = #tpu.dot_dimension_numbers<[1], [0], [0], [1], [0, 0, 1, 1], [], []>} : vector<2x32xf32>, vector<32x32xf32>, vector<2x32xf32> -> vector<2x32xf32>
    %39 = vector.broadcast %26 : vector<1x32xf32> to vector<2x32xf32>
    %40 = arith.addf %38, %39 : vector<2x32xf32>
    %41 = vector.extract_strided_slice %40 {offsets = [0, 0], sizes = [1, 32], strides = [1, 1]} : vector<2x32xf32> to vector<1x32xf32>
    %42 = vector.extract_strided_slice %40 {offsets = [1, 0], sizes = [1, 32], strides = [1, 1]} : vector<2x32xf32> to vector<1x32xf32>
    %43 = tpu.concatenate %41, %42, %41, %42 in 1 : vector<1x32xf32>, vector<1x32xf32>, vector<1x32xf32>, vector<1x32xf32> -> vector<1x128xf32>
    %44 = vector.broadcast %43 : vector<1x128xf32> to vector<9x128xf32>
    %45 = arith.mulf %36, %44 : vector<9x128xf32>
    %c128 = arith.constant 128 : index
    %c0_15 = arith.constant 0 : index
    %46 = vector.load %arg3[%c128, %c0_15] : memref<256x128xf32, #tpu.memory_space<vmem>>, vector<128x128xf32>
    %cst_16 = arith.constant dense<0.000000e+00> : vector<9x128xf32>
    %47 = tpu.matmul %45, %46, %cst_16 {dimension_numbers = #tpu.dot_dimension_numbers<[1], [0], [0], [1], [0, 0, 1, 1], [], []>} : vector<9x128xf32>, vector<128x128xf32>, vector<9x128xf32> -> vector<9x128xf32>
    %cst_17 = arith.constant dense<0xFF800000> : vector<128xf32>
    %48 = vector.multi_reduction <maximumf>, %47, %cst_17 [0] : vector<9x128xf32> to vector<128xf32>
    %49 = vector.shape_cast %48 : vector<128xf32> to vector<1x128xf32>
    %50 = vector.broadcast %49 : vector<1x128xf32> to vector<9x128xf32>
    %51 = arith.subf %47, %50 : vector<9x128xf32>
    %52 = math.exp %51 : vector<9x128xf32>
    %cst_18 = arith.constant dense<0.000000e+00> : vector<128xf32>
    %53 = vector.multi_reduction <add>, %52, %cst_18 [0] : vector<9x128xf32> to vector<128xf32>
    %54 = vector.shape_cast %53 : vector<128xf32> to vector<1x128xf32>
    %55 = tpu.reciprocal %54 {approx = true} : vector<1x128xf32> -> vector<1x128xf32>
    %56 = vector.broadcast %55 : vector<1x128xf32> to vector<9x128xf32>
    %57 = arith.mulf %52, %56 : vector<9x128xf32>
    %58 = arith.mulf %57, %36 : vector<9x128xf32>
    %cst_19 = arith.constant dense<0.000000e+00> : vector<128xf32>
    %59 = vector.multi_reduction <add>, %58, %cst_19 [0] : vector<9x128xf32> to vector<128xf32>
    %60 = vector.shape_cast %59 : vector<128xf32> to vector<1x128xf32>
    %61 = vector.extract_strided_slice %60 {offsets = [0, 64], sizes = [1, 32], strides = [1, 1]} : vector<1x128xf32> to vector<1x32xf32>
    %62 = vector.extract_strided_slice %60 {offsets = [0, 96], sizes = [1, 32], strides = [1, 1]} : vector<1x128xf32> to vector<1x32xf32>
    %63 = tpu.concatenate %61, %62 in 0 : vector<1x32xf32>, vector<1x32xf32> -> vector<2x32xf32>
    %cst_20 = arith.constant dense<0.000000e+00> : vector<2x32xf32>
    %64 = tpu.matmul %63, %20, %cst_20 {dimension_numbers = #tpu.dot_dimension_numbers<[1], [0], [0], [1], [0, 0, 1, 1], [], []>} : vector<2x32xf32>, vector<32x32xf32>, vector<2x32xf32> -> vector<2x32xf32>
    %65 = vector.broadcast %27 : vector<1x32xf32> to vector<2x32xf32>
    %66 = arith.addf %64, %65 : vector<2x32xf32>
    %67 = arith.addf %66, %37 : vector<2x32xf32>
    %cst_21 = arith.constant dense<0.000000e+00> : vector<2xf32>
    %68 = vector.multi_reduction <add>, %67, %cst_21 [1] : vector<2x32xf32> to vector<2xf32>
    %69 = vector.shape_cast %68 : vector<2xf32> to vector<2x1xf32>
    %cst_22 = arith.constant 3.200000e+01 : f32
    %70 = vector.broadcast %cst_22 : f32 to vector<2x1xf32>
    %71 = arith.divf %69, %70 : vector<2x1xf32>
    %72 = vector.broadcast %71 : vector<2x1xf32> to vector<2x32xf32>
    %73 = arith.subf %67, %72 : vector<2x32xf32>
    %74 = arith.mulf %73, %73 : vector<2x32xf32>
    %cst_23 = arith.constant dense<0.000000e+00> : vector<2xf32>
    %75 = vector.multi_reduction <add>, %74, %cst_23 [1] : vector<2x32xf32> to vector<2xf32>
    %76 = vector.shape_cast %75 : vector<2xf32> to vector<2x1xf32>
    %cst_24 = arith.constant 3.200000e+01 : f32
    %77 = vector.broadcast %cst_24 : f32 to vector<2x1xf32>
    %78 = arith.divf %76, %77 : vector<2x1xf32>
    %cst_25 = arith.constant 9.99999974E-6 : f32
    %79 = vector.broadcast %cst_25 : f32 to vector<2x1xf32>
    %80 = arith.addf %78, %79 : vector<2x1xf32>
    %81 = math.rsqrt %80 : vector<2x1xf32>
    %82 = vector.broadcast %81 : vector<2x1xf32> to vector<2x32xf32>
    %83 = arith.mulf %73, %82 : vector<2x32xf32>
    %84 = vector.broadcast %28 : vector<1x32xf32> to vector<2x32xf32>
    %85 = arith.mulf %83, %84 : vector<2x32xf32>
    %86 = vector.broadcast %29 : vector<1x32xf32> to vector<2x32xf32>
    %87 = arith.addf %85, %86 : vector<2x32xf32>
    %cst_26 = arith.constant dense<0.000000e+00> : vector<2x64xf32>
    %88 = tpu.matmul %87, %21, %cst_26 {dimension_numbers = #tpu.dot_dimension_numbers<[1], [0], [0], [1], [0, 0, 1, 1], [], []>} : vector<2x32xf32>, vector<32x64xf32>, vector<2x64xf32> -> vector<2x64xf32>
    %89 = vector.broadcast %25 : vector<1x64xf32> to vector<2x64xf32>
    %90 = arith.addf %88, %89 : vector<2x64xf32>
    %cst_27 = arith.constant 0.000000e+00 : f32
    %91 = vector.broadcast %cst_27 : f32 to vector<2x64xf32>
    %92 = arith.maximumf %90, %91 : vector<2x64xf32>
    %cst_28 = arith.constant dense<0.000000e+00> : vector<2x32xf32>
    %93 = tpu.matmul %92, %22, %cst_28 {dimension_numbers = #tpu.dot_dimension_numbers<[1], [0], [0], [1], [0, 0, 1, 1], [], []>} : vector<2x64xf32>, vector<64x32xf32>, vector<2x32xf32> -> vector<2x32xf32>
    %94 = vector.broadcast %32 : vector<1x32xf32> to vector<2x32xf32>
    %95 = arith.addf %93, %94 : vector<2x32xf32>
    %96 = arith.addf %95, %87 : vector<2x32xf32>
    %cst_29 = arith.constant dense<0.000000e+00> : vector<2xf32>
    %97 = vector.multi_reduction <add>, %96, %cst_29 [1] : vector<2x32xf32> to vector<2xf32>
    %98 = vector.shape_cast %97 : vector<2xf32> to vector<2x1xf32>
    %cst_30 = arith.constant 3.200000e+01 : f32
    %99 = vector.broadcast %cst_30 : f32 to vector<2x1xf32>
    %100 = arith.divf %98, %99 : vector<2x1xf32>
    %101 = vector.broadcast %100 : vector<2x1xf32> to vector<2x32xf32>
    %102 = arith.subf %96, %101 : vector<2x32xf32>
    %103 = arith.mulf %102, %102 : vector<2x32xf32>
    %cst_31 = arith.constant dense<0.000000e+00> : vector<2xf32>
    %104 = vector.multi_reduction <add>, %103, %cst_31 [1] : vector<2x32xf32> to vector<2xf32>
    %105 = vector.shape_cast %104 : vector<2xf32> to vector<2x1xf32>
    %cst_32 = arith.constant 3.200000e+01 : f32
    %106 = vector.broadcast %cst_32 : f32 to vector<2x1xf32>
    %107 = arith.divf %105, %106 : vector<2x1xf32>
    %cst_33 = arith.constant 9.99999974E-6 : f32
    %108 = vector.broadcast %cst_33 : f32 to vector<2x1xf32>
    %109 = arith.addf %107, %108 : vector<2x1xf32>
    %110 = math.rsqrt %109 : vector<2x1xf32>
    %111 = vector.broadcast %110 : vector<2x1xf32> to vector<2x32xf32>
    %112 = arith.mulf %102, %111 : vector<2x32xf32>
    %113 = vector.broadcast %30 : vector<1x32xf32> to vector<2x32xf32>
    %114 = arith.mulf %112, %113 : vector<2x32xf32>
    %115 = vector.broadcast %31 : vector<1x32xf32> to vector<2x32xf32>
    %116 = arith.addf %114, %115 : vector<2x32xf32>
    %c0_34 = arith.constant 0 : index
    %c0_35 = arith.constant 0 : index
    %117 = vector.load %arg6[%c0_34, %c0_35] : memref<2x32xf32, #tpu.memory_space<vmem>>, vector<2x32xf32>
    tpu.vector_store %arg6[%c0_34, %c0_35], %116 {strides = array<i32>} : memref<2x32xf32, #tpu.memory_space<vmem>>, vector<2x32xf32>,
    %c0_36 = arith.constant 0 : index
    %c0_37 = arith.constant 0 : index
    %118 = vector.load %arg7[%c0_36, %c0_37] : memref<9x128xf32, #tpu.memory_space<vmem>>, vector<9x128xf32>
    tpu.vector_store %arg7[%c0_36, %c0_37], %17 {strides = array<i32>} : memref<9x128xf32, #tpu.memory_space<vmem>>, vector<9x128xf32>,
    return
  }
}

</mosaic_0001>

<llo_original>
// kernel: streaming_tfm_layer.1
$region0: #{streaming_tfm_layer.1}
  #allocation0 [shape = 'u32[]', space=smem, size = 0x4, offset = 0x4, fixed_abs, tag = 'smem constant byte address 0x4 - core index']
  #allocation1 [shape = 'u32[72,128]{1,0:T(1,128)}', space=vmem, size = 0x9000, scoped, tag = 'internal scratch']
  %s0 = inlined_call_operand.vmem [shape: f32[2,1,32], index: 0, kind: input, shape index: {}]
  %s1 = inlined_call_operand.vmem [shape: f32[2,8,32], index: 1, kind: input, shape index: {}]
  %s2 = inlined_call_operand.vmem [shape: f32[2,8,32], index: 2, kind: input, shape index: {}]
  %s3 = inlined_call_operand.vmem [shape: f32[256,128], index: 3, kind: input, shape index: {}]
  %s4 = inlined_call_operand.vmem [shape: f32[160,64], index: 4, kind: input, shape index: {}]
  %s5 = inlined_call_operand.hbm [shape: f32[8,128], index: 5, kind: input, shape index: {}]
  %s6 = inlined_call_operand.hbm [shape: f32[2,32], index: 6, kind: output, shape index: {0}]
  %s7 = inlined_call_operand.vmem [shape: f32[9,128], index: 7, kind: output, shape index: {1}]
  %8 = xla_tuple %s6, %s7
  %s9 = sld [smem:[#allocation0]]
  $region46: #{streaming_tfm_layer.1} parent=0
    _
  %s11 = ssub.s32 1, %s9
  %s12 = scalar_select 0, %s11, %s9
  $region1: #{streaming_tfm_layer.1} parent=0
    #allocation2 [shape = 'u8[4096]{0}', space=vmem, size = 0x1000, scoped, tag = 'input window, operand 5, single buffered']
    #allocation3 [shape = 's32[1]{0}', space=sflag, size = 0x4, scoped, tag = 'scoped memory for streaming_tfm_layer.1']
    #allocation4 [shape = 's32[1]{0}', space=sflag, size = 0x4, scoped, tag = 'scoped memory for streaming_tfm_layer.1']
    #allocation5 [shape = 'u8[1024]{0}', space=vmem, size = 0x400, scoped, tag = 'output window, operand 0, single buffered']
    %13 = vsyncpa [#allocation3], 0
    %14 = vsyncpa [#allocation4], 0
    // Predicated region
    $region2: #{streaming_tfm_layer.1} parent=1 // pred_check
      _
    $region3: #{streaming_tfm_layer.1} parent=1 // pred_check_branch
      %16 = sbr.rel (0) target = $region5
    $region4: #{streaming_tfm_layer.1} parent=1 // pred_region
      _
    $region5: #{streaming_tfm_layer.1} parent=1 // pred_fallthru
      _
    // Predicated region
    $region6: #{streaming_tfm_layer.1} parent=1 // pred_check
      _
    $region7: #{streaming_tfm_layer.1} parent=1 // pred_check_branch
      %18 = sbr.rel (0) target = $region9
    $region8: #{streaming_tfm_layer.1} parent=1 // pred_region
      _
    $region9: #{streaming_tfm_layer.1} parent=1 // pred_fallthru
      _
    // Predicated region
    $region10: #{streaming_tfm_layer.1} parent=1 // pred_check
      _
    $region11: #{streaming_tfm_layer.1} parent=1 // pred_check_branch
      %20 = sbr.rel (0) target = $region13
    $region12: #{streaming_tfm_layer.1} parent=1 // pred_region
      _
    $region13: #{streaming_tfm_layer.1} parent=1 // pred_fallthru
      _
    // Predicated region
    $region14: #{streaming_tfm_layer.1} parent=1 // pred_check
      _
    $region15: #{streaming_tfm_layer.1} parent=1 // pred_check_branch
      %22 = sbr.rel (0) target = $region17
    $region16: #{streaming_tfm_layer.1} parent=1 // pred_region
      _
    $region17: #{streaming_tfm_layer.1} parent=1 // pred_fallthru
      _
    // Predicated region
    $region18: #{streaming_tfm_layer.1} parent=1 // pred_check
      _
    $region19: #{streaming_tfm_layer.1} parent=1 // pred_check_branch
      %24 = sbr.rel (0) target = $region21
    $region20: #{streaming_tfm_layer.1} parent=1 // pred_region
      _
    $region21: #{streaming_tfm_layer.1} parent=1 // pred_fallthru
      _
    // Predicated region
    $region22: #{streaming_tfm_layer.1} parent=1 // pred_check
      _
    $region23: #{streaming_tfm_layer.1} parent=1 // pred_check_branch
      %26 = sbr.rel (0) target = $region25
    $region24: #{streaming_tfm_layer.1} parent=1 // pred_region
      %28 = vsyncadd [#allocation3], 0
      %s30 = sshll.u32 %s5, 4
      %s31 = int_to_ptr.hbm [resolvable:$true] %s30
      %s32 = sshll.u32 [#allocation2], 4
      %s33 = int_to_ptr.vmem [resolvable:$true] %s32
      %35 = dma.hbm_to_vmem [thread:$0]  %s31, 128, %s33, [#allocation3]
    $region25: #{streaming_tfm_layer.1} parent=1 // pred_fallthru
      _
    // Predicated region
    $region26: #{streaming_tfm_layer.1} parent=1 // pred_check
      _
    $region27: #{streaming_tfm_layer.1} parent=1 // pred_check_branch
      %37 = sbr.rel (0) target = $region29
    $region28: #{streaming_tfm_layer.1} parent=1 // pred_region
      %39 = dma.done [#allocation3], 128
    $region29: #{streaming_tfm_layer.1} parent=1 // pred_fallthru
      _
    %v40 = vld [vmem:[%s0] sm:$0x1]
    %v41 = vld [vmem:[%s0 + $0x1] sm:$0x1]
    %v42 = vld [vmem:[%s1] sm:$0xff]
    %v43 = vld [vmem:[%s1 + $0x8] sm:$0xff]
    %v44 = vld [vmem:[%s2] sm:$0xff]
    %v45 = vld [vmem:[%s2 + $0x8] sm:$0xff]
    %47 = vrot.lane.b32.xlu0 %v43, 32
    %v48 = vpop.permute.xlu0 %47
    %51 = vrot.lane.b32.xlu0 %v44, 64
    %v52 = vpop.permute.xlu0 %51
    %55 = vrot.lane.b32.xlu0 %v45, 96
    %v56 = vpop.permute.xlu0 %55
    %vm58 = vcmask 261120
    %v59 = vsel %vm58, %v42, %v48
    %vm60 = vcmask 523264
    %v61 = vsel %vm60, %v59, %v52
    %vm62 = vcmask 785408
    %v63 = vsel %vm62, %v61, %v56
    %v65 = vperm.slane %v41, 0
    %66 = vrot.lane.b32.xlu0 %v65, 32
    %v67 = vpop.permute.xlu0 %66
    %v70 = vperm.slane %v40, 0
    %71 = vrot.lane.b32.xlu0 %v70, 64
    %v72 = vpop.permute.xlu0 %71
    %74 = vrot.lane.b32.xlu0 %v65, 96
    %v75 = vpop.permute.xlu0 %74
    %v77 = vsel %vm58, %v40, %v67
    %v78 = vsel %vm60, %v77, %v72
    %v79 = vsel %vm62, %v78, %v75
    %v80 = vld [vmem:[%s4] sm:$0xff]
    %v81 = vld [vmem:[%s4 + $0x8] sm:$0xff]
    %v82 = vld [vmem:[%s4 + $0x10] sm:$0xff]
    %v83 = vld [vmem:[%s4 + $0x18] sm:$0xff]
    %v84 = vld [vmem:[%s4 + $0x20] sm:$0xff]
    %v85 = vld [vmem:[%s4 + $0x28] sm:$0xff]
    %v86 = vld [vmem:[%s4 + $0x30] sm:$0xff]
    %v87 = vld [vmem:[%s4 + $0x38] sm:$0xff]
    %v88 = vld [vmem:[%s4 + $0x40] sm:$0xff]
    %v89 = vld [vmem:[%s4 + $0x48] sm:$0xff]
    %v90 = vld [vmem:[%s4 + $0x50] sm:$0xff]
    %v91 = vld [vmem:[%s4 + $0x58] sm:$0xff]
    %v92 = vld [vmem:[%s4 + $0x60] sm:$0xff]
    %v93 = vld [vmem:[%s4 + $0x68] sm:$0xff]
    %v94 = vld [vmem:[%s4 + $0x70] sm:$0xff]
    %v95 = vld [vmem:[%s4 + $0x78] sm:$0xff]
    %v96 = vld [vmem:[%s4 + $0x80] sm:$0xff]
    %v97 = vld [vmem:[%s4 + $0x88] sm:$0xff]
    %v98 = vld [vmem:[%s4 + $0x90] sm:$0xff]
    %v99 = vld [vmem:[%s4 + $0x98] sm:$0xff]
    %v100 = vld [vmem:[#allocation2] sm:$0xff]
    %v101 = vld [vmem:[%s3] sm:$0xff]
    %v102 = vld [vmem:[%s3 + $0x8] sm:$0xff]
    %v103 = vld [vmem:[%s3 + $0x10] sm:$0xff]
    %v104 = vld [vmem:[%s3 + $0x18] sm:$0xff]
    %v105 = vld [vmem:[%s3 + $0x20] sm:$0xff]
    %v106 = vld [vmem:[%s3 + $0x28] sm:$0xff]
    %v107 = vld [vmem:[%s3 + $0x30] sm:$0xff]
    %v108 = vld [vmem:[%s3 + $0x38] sm:$0xff]
    %v109 = vld [vmem:[%s3 + $0x40] sm:$0xff]
    %v110 = vld [vmem:[%s3 + $0x48] sm:$0xff]
    %v111 = vld [vmem:[%s3 + $0x50] sm:$0xff]
    %v112 = vld [vmem:[%s3 + $0x58] sm:$0xff]
    %v113 = vld [vmem:[%s3 + $0x60] sm:$0xff]
    %v114 = vld [vmem:[%s3 + $0x68] sm:$0xff]
    %v115 = vld [vmem:[%s3 + $0x70] sm:$0xff]
    %v116 = vld [vmem:[%s3 + $0x78] sm:$0xff]
    %v117 = vperm.slane %v100, 0
    %118 = vmatpush.msra.mxu0 %v116
    %119 = vmatpush.msra.mxu0 %v115
    %120 = vmatpush.msra.mxu0 %v114
    %121 = vmatpush.msra.mxu0 %v113
    %122 = vmatpush.msra.mxu0 %v112
    %123 = vmatpush.msra.mxu0 %v111
    %124 = vmatpush.msra.mxu0 %v110
    %125 = vmatpush.msra.mxu0 %v109
    %126 = vmatpush.msra.mxu0 %v108
    %127 = vmatpush.msra.mxu0 %v107
    %128 = vmatpush.msra.mxu0 %v106
    %129 = vmatpush.msra.mxu0 %v105
    %130 = vmatpush.msra.mxu0 %v104
    %131 = vmatpush.msra.mxu0 %v103
    %132 = vmatpush.msra.mxu0 %v102
    %133 = vmatpush.msra.mxu0 %v101
    %134 = vmatmul.f32.gmra.mxu0 %v63
    %v135 = vpop.f32.mrf.mxu0
    %v136 = vadd.f32 %v117, %v135
    %137 = vmatmul.f32.gmra.mxu0 %v79
    %v138 = vpop.f32.mrf.mxu0
    %v139 = vadd.f32 %v117, %v138
    %140 = vdwg.mxu0
    %v141 = vperm.slane %v100, 2
    %142 = vst [vmem:[#allocation1] ss:$9 sm:$0xff] %v40
    %s143 = scalar_lea.vmem [#allocation1], 1
    %144 = vst [vmem:[%s143] ss:$9 sm:$0xff] %v41
    %v145 = vld [vmem:[#allocation1] sm:$0xff]
    %v146 = vsel %vm58, %v145, 0
    %148 = vmatpush.msra.mxu0 0.0
    %149 = vmatpush.msra.mxu0 0.0
    %150 = vmatpush.msra.mxu0 0.0
    %151 = vmatpush.msra.mxu0 0.0
    %152 = vmatpush.msra.mxu0 0.0
    %153 = vmatpush.msra.mxu0 0.0
    %154 = vmatpush.msra.mxu0 0.0
    %155 = vmatpush.msra.mxu0 0.0
    %156 = vmatpush.msra.mxu0 0.0
    %157 = vmatpush.msra.mxu0 0.0
    %158 = vmatpush.msra.mxu0 0.0
    %159 = vmatpush.msra.mxu0 0.0
    %160 = vmatpush.msra.mxu0 %v83
    %161 = vmatpush.msra.mxu0 %v82
    %162 = vmatpush.msra.mxu0 %v81
    %163 = vmatpush.msra.mxu0 %v80
    %164 = vmatmul.f32.gmra.mxu0 %v146
    %v165 = vpop.f32.mrf.mxu0
    %v166 = vadd.f32 %v141, %v165
    %167 = vdwg.mxu0
    %v169 = vrot.slane %v166, 1
    %170 = vrot.lane.b32.xlu0 %v169, 32
    %v171 = vpop.permute.xlu0 %170
    %173 = vrot.lane.b32.xlu0 %v166, 64
    %v174 = vpop.permute.xlu0 %173
    %176 = vrot.lane.b32.xlu0 %v169, 96
    %v177 = vpop.permute.xlu0 %176
    %v179 = vsel %vm58, %v166, %v171
    %v180 = vsel %vm60, %v179, %v174
    %v181 = vsel %vm62, %v180, %v177
    %v182 = vperm.slane %v181, 0
    %v183 = vmul.f32 %v136, %v182
    %v184 = vmul.f32 %v139, %v182
    %v185 = vld [vmem:[%s3 + $0x80] sm:$0xff]
    %v186 = vld [vmem:[%s3 + $0x88] sm:$0xff]
    %v187 = vld [vmem:[%s3 + $0x90] sm:$0xff]
    %v188 = vld [vmem:[%s3 + $0x98] sm:$0xff]
    %v189 = vld [vmem:[%s3 + $0xa0] sm:$0xff]
    %v190 = vld [vmem:[%s3 + $0xa8] sm:$0xff]
    %v191 = vld [vmem:[%s3 + $0xb0] sm:$0xff]
    %v192 = vld [vmem:[%s3 + $0xb8] sm:$0xff]
    %v193 = vld [vmem:[%s3 + $0xc0] sm:$0xff]
    %v194 = vld [vmem:[%s3 + $0xc8] sm:$0xff]
    %v195 = vld [vmem:[%s3 + $0xd0] sm:$0xff]
    %v196 = vld [vmem:[%s3 + $0xd8] sm:$0xff]
    %v197 = vld [vmem:[%s3 + $0xe0] sm:$0xff]
    %v198 = vld [vmem:[%s3 + $0xe8] sm:$0xff]
    %v199 = vld [vmem:[%s3 + $0xf0] sm:$0xff]
    %v200 = vld [vmem:[%s3 + $0xf8] sm:$0xff]
    %201 = vmatpush.msra.mxu0 %v200
    %202 = vmatpush.msra.mxu0 %v199
    %203 = vmatpush.msra.mxu0 %v198
    %204 = vmatpush.msra.mxu0 %v197
    %205 = vmatpush.msra.mxu0 %v196
    %206 = vmatpush.msra.mxu0 %v195
    %207 = vmatpush.msra.mxu0 %v194
    %208 = vmatpush.msra.mxu0 %v193
    %209 = vmatpush.msra.mxu0 %v192
    %210 = vmatpush.msra.mxu0 %v191
    %211 = vmatpush.msra.mxu0 %v190
    %212 = vmatpush.msra.mxu0 %v189
    %213 = vmatpush.msra.mxu0 %v188
    %214 = vmatpush.msra.mxu0 %v187
    %215 = vmatpush.msra.mxu0 %v186
    %216 = vmatpush.msra.mxu0 %v185
    %217 = vmatmul.f32.gmra.mxu0 %v183
    %v218 = vpop.f32.mrf.mxu0
    %v219 = vadd.f32 0.0, %v218
    %220 = vmatmul.f32.gmra.mxu0 %v184
    %v221 = vpop.f32.mrf.mxu0
    %v222 = vadd.f32 0.0, %v221
    %223 = vdwg.mxu0
    %vm224 = vcmask 1040384
    %v225 = vsel %vm224, %v222, -inf
    %v226 = vmax.f32 %v219, %v225
    %v227 = vrot.slane %v226, 4
    %v228 = vmax.f32 %v226, %v227
    %v229 = vrot.slane %v228, 2
    %v230 = vmax.f32 %v228, %v229
    %v231 = vrot.slane %v230, 1
    %v232 = vmax.f32 %v230, %v231
    %v233 = vsub.f32 %v219, %v232
    %v234 = vsub.f32 %v222, %v232
    %v235 = vmul.f32 %v233, 1.442695
    %v236 = vpow.pop %v235
    %v237 = vmul.f32 %v234, 1.442695
    %v238 = vpow.pop %v237
    %v239 = vsel %vm224, %v238, 0.0
    %v240 = vadd.f32 %v236, %v239
    %v241 = vrot.slane %v240, 4
    %v242 = vadd.f32 %v240, %v241
    %v243 = vrot.slane %v242, 2
    %v244 = vadd.f32 %v242, %v243
    %v245 = vrot.slane %v244, 1
    %v246 = vadd.f32 %v244, %v245
    %v247 = vrcp.pop %v246
    %v248 = vmul.f32 %v236, %v247
    %v249 = vmul.f32 %v238, %v247
    %v250 = vmul.f32 %v248, %v136
    %v251 = vmul.f32 %v249, %v139
    %v252 = vsel %vm224, %v251, 0.0
    %v253 = vadd.f32 %v250, %v252
    %v254 = vrot.slane %v253, 4
    %v255 = vadd.f32 %v253, %v254
    %v256 = vrot.slane %v255, 2
    %v257 = vadd.f32 %v255, %v256
    %v258 = vrot.slane %v257, 1
    %v259 = vadd.f32 %v257, %v258
    %261 = vrot.lane.b32.xlu0 %v259, 96
    %v262 = vpop.permute.xlu0 %261
    %v264 = vsel %vm224, %v259, %v262
    %266 = vrot.lane.b32.xlu0 %v264, 64
    %v267 = vpop.permute.xlu0 %266
    %269 = vrot.lane.b32.xlu0 %v141, 96
    %v270 = vpop.permute.xlu0 %269
    %v272 = vsel %vm58, %v267, 0
    %274 = vmatpush.msra.mxu0 0.0
    %275 = vmatpush.msra.mxu0 0.0
    %276 = vmatpush.msra.mxu0 0.0
    %277 = vmatpush.msra.mxu0 0.0
    %278 = vmatpush.msra.mxu0 0.0
    %279 = vmatpush.msra.mxu0 0.0
    %280 = vmatpush.msra.mxu0 0.0
    %281 = vmatpush.msra.mxu0 0.0
    %282 = vmatpush.msra.mxu0 0.0
    %283 = vmatpush.msra.mxu0 0.0
    %284 = vmatpush.msra.mxu0 0.0
    %285 = vmatpush.msra.mxu0 0.0
    %286 = vmatpush.msra.mxu0 %v87
    %287 = vmatpush.msra.mxu0 %v86
    %288 = vmatpush.msra.mxu0 %v85
    %289 = vmatpush.msra.mxu0 %v84
    %290 = vmatmul.f32.gmra.mxu0 %v272
    %v291 = vpop.f32.mrf.mxu0
    %v292 = vadd.f32 %v270, %v291
    %293 = vdwg.mxu0
    %294 = vst [vmem:[#allocation1] ss:$9 sm:$0xff] %v40
    %s295 = scalar_lea.vmem [#allocation1], 1
    %296 = vst [vmem:[%s295] ss:$9 sm:$0xff] %v41
    %v297 = vld [vmem:[#allocation1] sm:$0xff]
    %v299 = vadd.f32 %v292, %v297
    %vm300 = vcmask 254976
    %v301 = vsel %vm300, %v299, 0.0
    %302 = vadd.xlane.f32.xlu0 %v301
    %v303 = vpop.xlane.xlu0 %302
    %v304 = vrcp.pop 32.0
    %v305 = vmul.f32 32.0, %v304
    %v306 = vsub.f32 1.0, %v305
    %v307 = vmul.f32 %v304, %v306
    %v308 = vadd.f32 %v304, %v307
    %vm309 = vweird.f32 %v304
    %v310 = vsel %vm309, %v304, %v308
    %v311 = vmul.f32 %v303, %v310
    %v312 = vsub.f32 %v299, %v311
    %v313 = vmul.f32 %v312, %v312
    %v314 = vsel %vm300, %v313, 0.0
    %315 = vadd.xlane.f32.xlu0 %v314
    %v316 = vpop.xlane.xlu0 %315
    %v317 = vmul.f32 %v316, %v310
    %v318 = vadd.f32 %v317, 1e-05
    %v319 = vrsqrt.pop %v318
    %v320 = vmul.f32 %v319, %v318
    %v321 = vmul.f32 %v320, %v319
    %v322 = vmul.f32 0.5, %v321
    %v323 = vsub.f32 1.5, %v322
    %v324 = vmul.f32 %v319, %v323
    %vm325 = vweird.f32 %v318
    %vm326 = vweird.f32 %v319
    %vm327 = vmor %vm325, %vm326
    %v328 = vsel %vm327, %v319, %v324
    %v329 = vmul.f32 %v312, %v328
    %v330 = vperm.slane %v100, 3
    %v331 = vmul.f32 %v329, %v330
    %333 = vrot.lane.b32.xlu0 %v330, 96
    %v334 = vpop.permute.xlu0 %333
    %v336 = vadd.f32 %v331, %v334
    %v337 = vperm.slane %v100, 1
    %v339 = vsel %vm58, %v336, 0
    %341 = vmatpush.msra.mxu0 0.0
    %342 = vmatpush.msra.mxu0 0.0
    %343 = vmatpush.msra.mxu0 0.0
    %344 = vmatpush.msra.mxu0 0.0
    %345 = vmatpush.msra.mxu0 0.0
    %346 = vmatpush.msra.mxu0 0.0
    %347 = vmatpush.msra.mxu0 0.0
    %348 = vmatpush.msra.mxu0 0.0
    %349 = vmatpush.msra.mxu0 0.0
    %350 = vmatpush.msra.mxu0 0.0
    %351 = vmatpush.msra.mxu0 0.0
    %352 = vmatpush.msra.mxu0 0.0
    %353 = vmatpush.msra.mxu0 %v91
    %354 = vmatpush.msra.mxu0 %v90
    %355 = vmatpush.msra.mxu0 %v89
    %356 = vmatpush.msra.mxu0 %v88
    %357 = vmatmul.f32.gmra.mxu0 %v339
    %v358 = vpop.f32.mrf.mxu0
    %v359 = vadd.f32 %v337, %v358
    %360 = vdwg.mxu0
    %v361 = vmax.f32 %v359, 0.0
    %v362 = vperm.slane %v100, 5
    %v364 = vsel %vm60, %v361, 0
    %366 = vmatpush.msra.mxu0 0.0
    %367 = vmatpush.msra.mxu0 0.0
    %368 = vmatpush.msra.mxu0 0.0
    %369 = vmatpush.msra.mxu0 0.0
    %370 = vmatpush.msra.mxu0 0.0
    %371 = vmatpush.msra.mxu0 0.0
    %372 = vmatpush.msra.mxu0 0.0
    %373 = vmatpush.msra.mxu0 0.0
    %374 = vmatpush.msra.mxu0 %v99
    %375 = vmatpush.msra.mxu0 %v98
    %376 = vmatpush.msra.mxu0 %v97
    %377 = vmatpush.msra.mxu0 %v96
    %378 = vmatpush.msra.mxu0 %v95
    %379 = vmatpush.msra.mxu0 %v94
    %380 = vmatpush.msra.mxu0 %v93
    %381 = vmatpush.msra.mxu0 %v92
    %382 = vmatmul.f32.gmra.mxu0 %v364
    %v383 = vpop.f32.mrf.mxu0
    %v384 = vadd.f32 %v362, %v383
    %385 = vdwg.mxu0
    %v386 = vadd.f32 %v384, %v336
    %v387 = vsel %vm300, %v386, 0.0
    %388 = vadd.xlane.f32.xlu0 %v387
    %v389 = vpop.xlane.xlu0 %388
    %v390 = vmul.f32 %v389, %v310
    %v391 = vsub.f32 %v386, %v390
    %v392 = vmul.f32 %v391, %v391
    %v393 = vsel %vm300, %v392, 0.0
    %394 = vadd.xlane.f32.xlu0 %v393
    %v395 = vpop.xlane.xlu0 %394
    %v396 = vmul.f32 %v395, %v310
    %v397 = vadd.f32 %v396, 1e-05
    %v398 = vrsqrt.pop %v397
    %v399 = vmul.f32 %v398, %v397
    %v400 = vmul.f32 %v399, %v398
    %v401 = vmul.f32 0.5, %v400
    %v402 = vsub.f32 1.5, %v401
    %v403 = vmul.f32 %v398, %v402
    %vm404 = vweird.f32 %v397
    %vm405 = vweird.f32 %v398
    %vm406 = vmor %vm404, %vm405
    %v407 = vsel %vm406, %v398, %v403
    %v408 = vmul.f32 %v391, %v407
    %v409 = vperm.slane %v100, 4
    %v410 = vmul.f32 %v408, %v409
    %412 = vrot.lane.b32.xlu0 %v409, 96
    %v413 = vpop.permute.xlu0 %412
    %v415 = vadd.f32 %v410, %v413
    %416 = vst.msk [vmem:[#allocation5] sm:$0x3] %vm300, %v415
    %417 = vst [vmem:[%s7] sm:$0xff] %v63
    %418 = vst [vmem:[%s7 + $0x8] sm:$0x1] %v79
    // Predicated region
    $region30: #{streaming_tfm_layer.1} parent=1 // pred_check
      _
    $region31: #{streaming_tfm_layer.1} parent=1 // pred_check_branch
      %420 = sbr.rel (0) target = $region33
    $region32: #{streaming_tfm_layer.1} parent=1 // pred_region
      %422 = vsyncadd [#allocation4], 0
      %s424 = sshll.u32 [#allocation5], 4
      %s425 = int_to_ptr.vmem [resolvable:$true] %s424
      %s426 = sshll.u32 %s6, 4
      %s427 = int_to_ptr.hbm [resolvable:$true] %s426
      %429 = dma.vmem_to_hbm [thread:$0]  %s425, 32, %s427, [#allocation4]
    $region33: #{streaming_tfm_layer.1} parent=1 // pred_fallthru
      _
    // Predicated region
    $region34: #{streaming_tfm_layer.1} parent=1 // pred_check
      _
    $region35: #{streaming_tfm_layer.1} parent=1 // pred_check_branch
      %431 = sbr.rel (0) target = $region37
    $region36: #{streaming_tfm_layer.1} parent=1 // pred_region
      _
    $region37: #{streaming_tfm_layer.1} parent=1 // pred_fallthru
      _
    // Predicated region
    $region38: #{streaming_tfm_layer.1} parent=1 // pred_check
      _
    $region39: #{streaming_tfm_layer.1} parent=1 // pred_check_branch
      %433 = sbr.rel (0) target = $region41
    $region40: #{streaming_tfm_layer.1} parent=1 // pred_region
      %435 = dma.done [#allocation4], 32
    $region41: #{streaming_tfm_layer.1} parent=1 // pred_fallthru
      _
    // Predicated region
    $region42: #{streaming_tfm_layer.1} parent=1 // pred_check
      _
    $region43: #{streaming_tfm_layer.1} parent=1 // pred_check_branch
      %437 = sbr.rel (0) target = $region45
    $region44: #{streaming_tfm_layer.1} parent=1 // pred_region
      _
    $region45: #{streaming_tfm_layer.1} parent=1 // pred_fallthru
      _
    %438 = vsyncpa [#allocation3], 1
    %439 = vsyncpa [#allocation4], 1

</llo_original>
